<compile_context>
chip_gen: v7x
topology: tpu7x:2x2x1
jax: 0.10.0
libtpu: 0.0.40
codegen_flags: <defaults>
</compile_context>

<pallas_src>
import jax
import jax.numpy as jnp
from jax.experimental import pallas as pl
from jax.experimental.pallas import tpu as pltpu

_SUBLANES = 8
_ROW_CAP = 4096                         # amortizes per-step overhead on v7x HBM
_DEFAULT_VMEM_CAP = 64 * 1024 * 1024    # v7x-safe fallback if query fails
_VMEM_FRACTION = 0.55                   # fraction of physical VMEM we plan to occupy
_VMEM_FLOOR = 32 * 1024 * 1024
_F32_TEMP_PLANES = 6                    # live f32 (tn, C) intermediates (conservative)


def _round_up(x, m):
    return ((x + m - 1) // m) * m


def _vmem_capacity_bytes():
    try:
        cap = int(getattr(pltpu.get_tpu_info(), "vmem_capacity_bytes"))
        if cap > 0:
            return cap
    except Exception:
        pass
    return _DEFAULT_VMEM_CAP


def _make_evoloss_kernel(use_perp: bool, use_ce: bool):
    """Returns a Pallas kernel closing over the static config flags."""

    def evoloss_kernel(exp_ref, pred_ref, *out_refs):
        # (tn, C) tiles; accumulate in f32 regardless of input dtype (bf16 ok).
        e = exp_ref[...].astype(jnp.float32)    # "expected"  -> logits for CE
        p = pred_ref[...].astype(jnp.float32)   # "predicted" -> probabilities

        idx = 0
        if use_ce:
            # soft-target cross-entropy, reduction='none':
            #   ce_n = -sum_c p[n,c] * log_softmax(e)[n,c]
            #        =  lse_n * sum_c p[n,c] - sum_c p[n,c]*e[n,c]
            ce_ref = out_refs[idx]
            idx += 1
            m = jnp.max(e, axis=-1, keepdims=True)                           # (tn, 1)
            lse = m + jnp.log(jnp.sum(jnp.exp(e - m), axis=-1, keepdims=True))
            sum_p = jnp.sum(p, axis=-1, keepdims=True)                        # (tn, 1)
            sum_pe = jnp.sum(p * e, axis=-1, keepdims=True)                   # (tn, 1)
            ce_ref[...] = (lse * sum_p - sum_pe).astype(ce_ref.dtype)

        if use_perp:
            # Per-row partials of the *global* sum(e * log(p)); the wrapper sums them
            # and applies exp(-sum), so row tiling is exact.  Rows past N (ragged last
            # tile) are written out of bounds and dropped, so no masking is needed.
            xent_ref = out_refs[idx]
            xent_ref[...] = jnp.sum(e * jnp.log(p), axis=-1,
                                    keepdims=True).astype(xent_ref.dtype)

    return evoloss_kernel


def evo_loss(expected_output, predicted_output, config, *, tile_rows=None):
    """Pallas-backed EvoLoss forward.  Inputs are (N, C) float arrays (f32 or bf16)."""
    N, C = expected_output.shape
    loss_type = config["loss_type"]
    w_perp = float(loss_type["perplexity"]) if "perplexity" in loss_type else 0.0
    w_ce = float(loss_type["crossentropy"]) if "crossentropy" in loss_type else 0.0
    use_perp = w_perp != 0.0
    use_ce = w_ce != 0.0

    if not use_perp and not use_ce:
        # TODO(synk): the PyTorch module returns the python float 0.0 here; we return a
        # zero (N,) vector instead.
        return jnp.zeros((N,), jnp.float32)

    e_item = jnp.dtype(expected_output.dtype).itemsize
    p_item = jnp.dtype(predicted_output.dtype).itemsize
    in_itemsize = e_item + p_item

    # ---- tile-row selection: size from the *actual* VMEM capacity of this generation,
    # ---- accounting for double-buffered input tiles plus the live f32 temporaries.
    vmem_cap = _vmem_capacity_bytes()
    per_row_bytes = 2 * C * in_itemsize + _F32_TEMP_PLANES * C * 4
    tn = int(vmem_cap * _VMEM_FRACTION) // per_row_bytes
    tn = max(_SUBLANES, min(_ROW_CAP, (tn // _SUBLANES) * _SUBLANES))
    if tile_rows is not None:                       # test / tuning override
        tn = max(_SUBLANES, (int(tile_rows) // _SUBLANES) * _SUBLANES)
    tn = min(tn, _round_up(N, _SUBLANES))
    num_tiles = pl.cdiv(N, tn)

    # ---- outputs: byte-minimal (N, 1) f32 columns, one per active loss term.
    out_shapes = []
    out_specs = []
    if use_ce:
        out_shapes.append(jax.ShapeDtypeStruct((N, 1), jnp.float32))
        out_specs.append(pl.BlockSpec((tn, 1), lambda i: (i, 0)))
    if use_perp:
        out_shapes.append(jax.ShapeDtypeStruct((N, 1), jnp.float32))
        out_specs.append(pl.BlockSpec((tn, 1), lambda i: (i, 0)))
    n_out = len(out_shapes)

    # ---- explicit VMEM limit: count everything, never clamp below the need.
    vmem_need = (2 * tn * C * in_itemsize                # double-buffered input tiles
                 + _F32_TEMP_PLANES * tn * C * 4         # live f32 intermediates
                 + 2 * n_out * tn * 4)                   # double-buffered output tiles
    vmem_limit = int(min(vmem_cap, max(_VMEM_FLOOR, (vmem_need * 5) // 4)))
    vmem_limit = max(vmem_limit, int(vmem_need))

    # ---- advisory cost estimate for XLA scheduling around the custom call.
    flops = 0
    trans = 0
    if use_ce:
        flops += 5 * N * C
        trans += N * C + N
    if use_perp:
        flops += 3 * N * C
        trans += N * C
    cost = pl.CostEstimate(
        flops=int(flops),
        transcendentals=int(trans),
        bytes_accessed=int(N * C * in_itemsize + n_out * N * 4),
    )

    kernel = _make_evoloss_kernel(use_perp, use_ce)

    outs = pl.pallas_call(
        kernel,
        out_shape=tuple(out_shapes),
        grid_spec=pl.GridSpec(
            grid=(num_tiles,),
            in_specs=[
                pl.BlockSpec((tn, C), lambda i: (i, 0)),
                pl.BlockSpec((tn, C), lambda i: (i, 0)),
            ],
            out_specs=out_specs,
        ),
        compiler_params=pltpu.CompilerParams(
            dimension_semantics=("parallel",),     # rows are embarrassingly parallel
            vmem_limit_bytes=vmem_limit,
        ),
        cost_estimate=cost,
    )(expected_output, predicted_output)

    if not isinstance(outs, (tuple, list)):
        outs = (outs,)

    result = jnp.zeros((N,), jnp.float32)
    idx = 0
    if use_ce:
        result = result + w_ce * outs[idx][:, 0]
        idx += 1
    if use_perp:
        # Global perplexity; exp of a full-tensor sum matches the (numerically fragile)
        # PyTorch reference exactly.
        total_xent = jnp.sum(outs[idx][:, 0])
        result = result + w_perp * jnp.exp(-total_xent)
    return result


def evo_loss_ref(expected_output, predicted_output, config):
    """Pure-JAX reference for sanity checking."""
    e = expected_output.astype(jnp.float32)
    p = predicted_output.astype(jnp.float32)
    loss_type = config["loss_type"]
    out = jnp.zeros((e.shape[0],), jnp.float32)
    if "perplexity" in loss_type:
        perp = jnp.exp(-jnp.sum(e * jnp.log(p)))
        out = out + perp * loss_type["perplexity"]
    if "crossentropy" in loss_type:
        lsm = jax.nn.log_softmax(e, axis=-1)
        ce = -jnp.sum(p * lsm, axis=-1)
        out = out + ce * loss_type["crossentropy"]
    return out


if __name__ == "__main__":
    key = jax.random.PRNGKey(0)
    k1, k2, k3, k4, k5, k6 = jax.random.split(key, 6)

    # --- test 1: both loss terms, tile-friendly (8, 128) ----------------------
    config_both = {"loss_type": {"perplexity": 0.3, "crossentropy": 0.7}}
    N, C = 8, 128
    expected = 0.05 * jax.random.normal(k1, (N, C), dtype=jnp.float32)
    predicted = jax.nn.softmax(jax.random.normal(k2, (N, C), dtype=jnp.float32), axis=-1)
    out = evo_loss(expected, predicted, config_both)
    jax.block_until_ready(out)
    ref = evo_loss_ref(expected, predicted, config_both)
    assert out.shape == (N,)
    assert jnp.allclose(out, ref, rtol=2e-4, atol=1e-4), (out, ref)

    # --- test 2: crossentropy only, ragged N / non-128 C (pad-free tail tile) -
    config_ce = {"loss_type": {"crossentropy": 1.0}}
    N2, C2 = 12, 160
    e2 = jax.random.normal(k3, (N2, C2), dtype=jnp.float32)
    p2 = jax.nn.softmax(jax.random.normal(k4, (N2, C2), dtype=jnp.float32), axis=-1)
    out2 = evo_loss(e2, p2, config_ce)
    jax.block_until_ready(out2)
    ref2 = evo_loss_ref(e2, p2, config_ce)
    assert out2.shape == (N2,)
    assert jnp.allclose(out2, ref2, rtol=2e-4, atol=1e-4), (out2, ref2)

    # --- test 3: perplexity only, bf16 inputs (reduced-bandwidth path) --------
    config_p = {"loss_type": {"perplexity": 1.0}}
    N3, C3 = 16, 256
    e3 = (0.01 * jax.random.normal(k1, (N3, C3), dtype=jnp.float32)).astype(jnp.bfloat16)
    p3 = jax.nn.softmax(jax.random.normal(k2, (N3, C3), dtype=jnp.float32),
                        axis=-1).astype(jnp.bfloat16)
    out3 = evo_loss(e3, p3, config_p)
    jax.block_until_ready(out3)
    ref3 = evo_loss_ref(e3, p3, config_p)
    assert out3.shape == (N3,)
    assert jnp.allclose(out3, ref3, rtol=2e-2, atol=1e-2), (out3, ref3)

    # --- test 4: no configured loss -> zeros ----------------------------------
    out4 = evo_loss(expected, predicted, {"loss_type": {}})
    jax.block_until_ready(out4)
    assert out4.shape == (N,) and float(jnp.max(jnp.abs(out4))) == 0.0

    # --- test 5: multi-tile grid + ragged last tile, both terms ---------------
    N5, C5 = 20, 128
    e5 = 0.02 * jax.random.normal(k5, (N5, C5), dtype=jnp.float32)
    p5 = jax.nn.softmax(jax.random.normal(k6, (N5, C5), dtype=jnp.float32), axis=-1)
    out5 = evo_loss(e5, p5, config_both, tile_rows=8)   # 3 tiles: 8 + 8 + ragged 4
    jax.block_until_ready(out5)
    ref5 = evo_loss_ref(e5, p5, config_both)
    assert out5.shape == (N5,)
    assert jnp.allclose(out5, ref5, rtol=2e-4, atol=1e-4), (out5, ref5)

    print("KERNEL_OK")
</pallas_src>

<mosaic_0001>
module attributes {stable_mosaic.version = 11 : i64} {
  func.func @evoloss_kernel(%arg0: i32, %arg1: memref<8x128xf32, #tpu.memory_space<vmem>>, %arg2: memref<8x128xf32, #tpu.memory_space<vmem>>, %arg3: memref<8x1xf32, #tpu.memory_space<vmem>>, %arg4: memref<8x1xf32, #tpu.memory_space<vmem>>) attributes {dimension_semantics = [#tpu.dimension_semantics<parallel>], iteration_bounds = array<i64: 1>, scalar_prefetch = 0 : i64, scratch_operands = 0 : i64, tpu.core_type = #tpu.core_type<tc>, window_params = [{transform_indices = @transform_0, window_bounds = array<i64: 8, 128>}, {transform_indices = @transform_1, window_bounds = array<i64: 8, 128>}, {transform_indices = @transform_2, window_bounds = array<i64: 8, 1>}, {transform_indices = @transform_3, window_bounds = array<i64: 8, 1>}]} {
    %c0 = arith.constant 0 : index
    %c0_0 = arith.constant 0 : index
    %0 = vector.load %arg1[%c0, %c0_0] : memref<8x128xf32, #tpu.memory_space<vmem>>, vector<8x128xf32>
    %c0_1 = arith.constant 0 : index
    %c0_2 = arith.constant 0 : index
    %1 = vector.load %arg2[%c0_1, %c0_2] : memref<8x128xf32, #tpu.memory_space<vmem>>, vector<8x128xf32>
    %cst = arith.constant dense<0xFF800000> : vector<8xf32>
    %2 = vector.multi_reduction <maximumf>, %0, %cst [1] : vector<8x128xf32> to vector<8xf32>
    %3 = vector.shape_cast %2 : vector<8xf32> to vector<8x1xf32>
    %4 = vector.broadcast %3 : vector<8x1xf32> to vector<8x128xf32>
    %5 = arith.subf %0, %4 : vector<8x128xf32>
    %6 = math.exp %5 : vector<8x128xf32>
    %cst_3 = arith.constant dense<0.000000e+00> : vector<8xf32>
    %7 = vector.multi_reduction <add>, %6, %cst_3 [1] : vector<8x128xf32> to vector<8xf32>
    %8 = vector.shape_cast %7 : vector<8xf32> to vector<8x1xf32>
    %9 = math.log %8 : vector<8x1xf32>
    %10 = arith.addf %3, %9 : vector<8x1xf32>
    %cst_4 = arith.constant dense<0.000000e+00> : vector<8xf32>
    %11 = vector.multi_reduction <add>, %1, %cst_4 [1] : vector<8x128xf32> to vector<8xf32>
    %12 = vector.shape_cast %11 : vector<8xf32> to vector<8x1xf32>
    %13 = arith.mulf %1, %0 : vector<8x128xf32>
    %cst_5 = arith.constant dense<0.000000e+00> : vector<8xf32>
    %14 = vector.multi_reduction <add>, %13, %cst_5 [1] : vector<8x128xf32> to vector<8xf32>
    %15 = vector.shape_cast %14 : vector<8xf32> to vector<8x1xf32>
    %16 = arith.mulf %10, %12 : vector<8x1xf32>
    %17 = arith.subf %16, %15 : vector<8x1xf32>
    %c0_6 = arith.constant 0 : index
    %c0_7 = arith.constant 0 : index
    %18 = vector.load %arg3[%c0_6, %c0_7] : memref<8x1xf32, #tpu.memory_space<vmem>>, vector<8x1xf32>
    tpu.vector_store %arg3[%c0_6, %c0_7], %17 {strides = array<i32>} : memref<8x1xf32, #tpu.memory_space<vmem>>, vector<8x1xf32>,
    %19 = math.log %1 : vector<8x128xf32>
    %20 = arith.mulf %0, %19 : vector<8x128xf32>
    %cst_8 = arith.constant dense<0.000000e+00> : vector<8xf32>
    %21 = vector.multi_reduction <add>, %20, %cst_8 [1] : vector<8x128xf32> to vector<8xf32>
    %22 = vector.shape_cast %21 : vector<8xf32> to vector<8x1xf32>
    %c0_9 = arith.constant 0 : index
    %c0_10 = arith.constant 0 : index
    %23 = vector.load %arg4[%c0_9, %c0_10] : memref<8x1xf32, #tpu.memory_space<vmem>>, vector<8x1xf32>
    tpu.vector_store %arg4[%c0_9, %c0_10], %22 {strides = array<i32>} : memref<8x1xf32, #tpu.memory_space<vmem>>, vector<8x1xf32>,
    return
  }
  func.func @transform_0(%arg0: i32) -> (i32, i32) {
    %c0_i32 = arith.constant 0 : i32
    %c0_i32_0 = arith.constant 0 : i32
    return %arg0, %c0_i32 : i32, i32
  }
  func.func @transform_1(%arg0: i32) -> (i32, i32) {
    %c0_i32 = arith.constant 0 : i32
    %c0_i32_0 = arith.constant 0 : i32
    return %arg0, %c0_i32 : i32, i32
  }
  func.func @transform_2(%arg0: i32) -> (i32, i32) {
    %c0_i32 = arith.constant 0 : i32
    %c0_i32_0 = arith.constant 0 : i32
    return %arg0, %c0_i32 : i32, i32
  }
  func.func @transform_3(%arg0: i32) -> (i32, i32) {
    %c0_i32 = arith.constant 0 : i32
    %c0_i32_0 = arith.constant 0 : i32
    return %arg0, %c0_i32 : i32, i32
  }
}

</mosaic_0001>

<llo_original>
// kernel: tpu_custom_call.1
$region0: #{tpu_custom_call.1}
  #allocation0 [shape = 'u32[]', space=smem, size = 0x4, offset = 0x4, fixed_abs, tag = 'smem constant byte address 0x4 - core index']
  #allocation1 [shape = 'u32[144,128]{1,0:T(1,128)}', space=vmem, size = 0x12000, scoped, tag = 'internal scratch']
  %s0 = inlined_call_operand.hbm [shape: f32[8,128], index: 0, kind: input, shape index: {}]
  %s1 = inlined_call_operand.hbm [shape: f32[8,128], index: 1, kind: input, shape index: {}]
  %s2 = inlined_call_operand.vmem [shape: f32[8,1], index: 2, kind: output, shape index: {0}]
  %s3 = inlined_call_operand.vmem [shape: f32[8,1], index: 3, kind: output, shape index: {1}]
  %4 = xla_tuple %s2, %s3
  %s5 = sld [smem:[#allocation0]]
  $region34: #{tpu_custom_call.1} parent=0
    _
  %s7 = ssub.s32 1, %s5
  %s8 = scalar_select 0, %s7, %s5
  $region1: #{tpu_custom_call.1} parent=0
    #allocation2 [shape = 'u8[4096]{0}', space=vmem, size = 0x1000, scoped, tag = 'input window, operand 0, single buffered']
    #allocation3 [shape = 's32[1]{0}', space=sflag, size = 0x4, scoped, tag = 'scoped memory for tpu_custom_call.1']
    #allocation4 [shape = 'u8[4096]{0}', space=vmem, size = 0x1000, scoped, tag = 'input window, operand 1, single buffered']
    #allocation5 [shape = 's32[1]{0}', space=sflag, size = 0x4, scoped, tag = 'scoped memory for tpu_custom_call.1']
    %9 = vsyncpa [#allocation3], 0
    %10 = vsyncpa [#allocation5], 0
    // Predicated region
    $region2: #{tpu_custom_call.1} parent=1 // pred_check
      _
    $region3: #{tpu_custom_call.1} parent=1 // pred_check_branch
      %12 = sbr.rel (0) target = $region5
    $region4: #{tpu_custom_call.1} parent=1 // pred_region
      %s14 = ssub.s32 128, 128
      %15 = vsyncadd [#allocation3], %s14
      %s17 = sshll.u32 [#allocation2], 4
      %s18 = int_to_ptr.vmem [resolvable:$true] %s17
      %20 = dma.hbm_to_vmem [thread:$0]  %s0, 128, %s18, [#allocation3]
    $region5: #{tpu_custom_call.1} parent=1 // pred_fallthru
      _
    // Predicated region
    $region6: #{tpu_custom_call.1} parent=1 // pred_check
      _
    $region7: #{tpu_custom_call.1} parent=1 // pred_check_branch
      %22 = sbr.rel (0) target = $region9
    $region8: #{tpu_custom_call.1} parent=1 // pred_region
      %s24 = ssub.s32 128, 128
      %25 = vsyncadd [#allocation5], %s24
      %s27 = sshll.u32 [#allocation4], 4
      %s28 = int_to_ptr.vmem [resolvable:$true] %s27
      %30 = dma.hbm_to_vmem [thread:$0]  %s1, 128, %s28, [#allocation5]
    $region9: #{tpu_custom_call.1} parent=1 // pred_fallthru
      _
    // Predicated region
    $region10: #{tpu_custom_call.1} parent=1 // pred_check
      _
    $region11: #{tpu_custom_call.1} parent=1 // pred_check_branch
      %32 = sbr.rel (0) target = $region13
    $region12: #{tpu_custom_call.1} parent=1 // pred_region
      %33 = dma.done [#allocation3], 128
    $region13: #{tpu_custom_call.1} parent=1 // pred_fallthru
      _
    // Predicated region
    $region14: #{tpu_custom_call.1} parent=1 // pred_check
      _
    $region15: #{tpu_custom_call.1} parent=1 // pred_check_branch
      %35 = sbr.rel (0) target = $region17
    $region16: #{tpu_custom_call.1} parent=1 // pred_region
      %36 = dma.done [#allocation5], 128
    $region17: #{tpu_custom_call.1} parent=1 // pred_fallthru
      _
    %v37 = vld [vmem:[#allocation2] sm:$0xff]
    %v38 = vld [vmem:[#allocation4] sm:$0xff]
    %39 = vmax.xlane.f32.xlu0 %v37
    %v40 = vpop.xlane.xlu0 %39
    %v41 = vsub.f32 %v37, %v40
    %v42 = vmul.f32 %v41, 1.442695
    %v43 = vpow.pop %v42
    %44 = vadd.xlane.f32.xlu0 %v43
    %v45 = vpop.xlane.xlu0 %44
    %v46 = vlog2.pop %v45
    %v47 = vmul.f32 %v46, 0.6931472
    %v48 = vadd.f32 %v40, %v47
    %49 = vadd.xlane.f32.xlu0 %v38
    %v50 = vpop.xlane.xlu0 %49
    %v51 = vmul.f32 %v38, %v37
    %52 = vadd.xlane.f32.xlu0 %v51
    %v53 = vpop.xlane.xlu0 %52
    %v54 = vmul.f32 %v48, %v50
    %v55 = vsub.f32 %v54, %v53
    %vm56 = vcmask 7168
    %57 = vst.msk [vmem:[%s2] sm:$0xff] %vm56, %v55
    %v58 = vlog2.pop %v38
    %v59 = vmul.f32 %v58, 0.6931472
    %v60 = vmul.f32 %v37, %v59
    %61 = vadd.xlane.f32.xlu0 %v60
    %v62 = vpop.xlane.xlu0 %61
    %63 = vst.msk [vmem:[%s3] sm:$0xff] %vm56, %v62
    // Predicated region
    $region18: #{tpu_custom_call.1} parent=1 // pred_check
      _
    $region19: #{tpu_custom_call.1} parent=1 // pred_check_branch
      %65 = sbr.rel (0) target = $region21
    $region20: #{tpu_custom_call.1} parent=1 // pred_region
      _
    $region21: #{tpu_custom_call.1} parent=1 // pred_fallthru
      _
    // Predicated region
    $region22: #{tpu_custom_call.1} parent=1 // pred_check
      _
    $region23: #{tpu_custom_call.1} parent=1 // pred_check_branch
      %67 = sbr.rel (0) target = $region25
    $region24: #{tpu_custom_call.1} parent=1 // pred_region
      _
    $region25: #{tpu_custom_call.1} parent=1 // pred_fallthru
      _
    // Predicated region
    $region26: #{tpu_custom_call.1} parent=1 // pred_check
      _
    $region27: #{tpu_custom_call.1} parent=1 // pred_check_branch
      %69 = sbr.rel (0) target = $region29
    $region28: #{tpu_custom_call.1} parent=1 // pred_region
      _
    $region29: #{tpu_custom_call.1} parent=1 // pred_fallthru
      _
    // Predicated region
    $region30: #{tpu_custom_call.1} parent=1 // pred_check
      _
    $region31: #{tpu_custom_call.1} parent=1 // pred_check_branch
      %71 = sbr.rel (0) target = $region33
    $region32: #{tpu_custom_call.1} parent=1 // pred_region
      _
    $region33: #{tpu_custom_call.1} parent=1 // pred_fallthru
      _
    %72 = vsyncpa [#allocation3], 1
    %73 = vsyncpa [#allocation5], 1

</llo_original>
